<compile_context>
chip_gen: v6e
topology: v6e:2x2x1
jax: 0.10.0
libtpu: 0.0.40
codegen_flags: <defaults>
</compile_context>

<pallas_src>
import jax
import jax.numpy as jnp
from jax.experimental import pallas as pl
from jax.experimental.pallas import tpu as pltpu

LANE = 128


def _round_up(x, m):
    return (x + m - 1) // m * m


# ----------------------------------------------------------------------------
# Pallas kernel 1: fused BatchNorm(eval, folded) + ReLU + 3x3 conv (pad=1, no bias)
# NHWC layout, channels padded to a multiple of 128 (lane-dense), one fused
# bf16 im2col matmul with K = 9 * Cin_pad, f32 accumulation.
# Grid iterates over the batch; each step processes one whole image.
# ----------------------------------------------------------------------------
def _bn_relu_conv3x3_kernel(x_ref, scale_ref, shift_ref, w_ref, o_ref, pad_ref):
    _, H, W, C = x_ref.shape          # C = Cin padded to a multiple of 128
    Cout = o_ref.shape[-1]            # Cout padded to a multiple of 128

    # Zero only the 1-pixel halo border of the scratch.  The (H, W) interior is
    # fully overwritten below on every grid step, so nothing else needs zeroing.
    zero_row = jnp.zeros((1, W + 2, C), jnp.float32)
    pad_ref[0:1] = zero_row
    pad_ref[H + 1:H + 2] = zero_row
    zero_col = jnp.zeros((H + 2, 1, C), jnp.float32)
    pad_ref[:, 0:1] = zero_col
    pad_ref[:, W + 1:W + 2] = zero_col

    # Folded BatchNorm (eval stats) + ReLU written into the scratch interior.
    x = x_ref[0].astype(jnp.float32)                       # (H, W, C)
    scale = scale_ref[...].reshape(1, 1, C)
    shift = shift_ref[...].reshape(1, 1, C)
    pad_ref[1:H + 1, 1:W + 1, :] = jnp.maximum(x * scale + shift, 0.0)

    # im2col: nine lane-aligned (H*W, C) taps concatenated along the lane axis
    # -> one fused bf16 matmul with K = 9*C on the MXU (f32 accumulation).
    taps = [
        pad_ref[dy:dy + H, dx:dx + W, :].reshape(H * W, C)
        for dy in range(3) for dx in range(3)
    ]
    patch = jnp.concatenate(taps, axis=-1).astype(jnp.bfloat16)      # (H*W, 9*C)
    acc = jnp.dot(patch, w_ref[...], preferred_element_type=jnp.float32)  # (H*W, Cout)
    o_ref[0] = acc.reshape(H, W, Cout).astype(o_ref.dtype)


def bn_relu_conv3x3(x_nhwc, bn_scale, bn_shift, w_taps):
    """x_nhwc: (N,H,W,Cin) f32; bn_*: (1,Cin) f32; w_taps: (9,Cin,Cout) f32."""
    N, H, W, Cin = x_nhwc.shape
    Cout = w_taps.shape[-1]
    Cin_p = _round_up(Cin, LANE)
    Cout_p = _round_up(Cout, LANE)

    # Lane-dense operands: zero-pad channels to a multiple of 128.  The padded
    # input channels multiply zero weight rows, so they contribute nothing.
    x_p = jnp.pad(x_nhwc, ((0, 0), (0, 0), (0, 0), (0, Cin_p - Cin)))
    scale_p = jnp.pad(bn_scale, ((0, 0), (0, Cin_p - Cin)))
    shift_p = jnp.pad(bn_shift, ((0, 0), (0, Cin_p - Cin)))
    w_p = jnp.pad(w_taps, ((0, 0), (0, Cin_p - Cin), (0, Cout_p - Cout)))
    w_fused = w_p.reshape(9 * Cin_p, Cout_p).astype(jnp.bfloat16)    # (9*Cin_p, Cout_p)

    out = pl.pallas_call(
        _bn_relu_conv3x3_kernel,
        out_shape=jax.ShapeDtypeStruct((N, H, W, Cout_p), jnp.float32),
        grid=(N,),
        in_specs=[
            pl.BlockSpec((1, H, W, Cin_p), lambda n: (n, 0, 0, 0)),
            pl.BlockSpec((1, Cin_p), lambda n: (0, 0)),
            pl.BlockSpec((1, Cin_p), lambda n: (0, 0)),
            pl.BlockSpec((9 * Cin_p, Cout_p), lambda n: (0, 0)),
        ],
        out_specs=pl.BlockSpec((1, H, W, Cout_p), lambda n: (n, 0, 0, 0)),
        scratch_shapes=[pltpu.VMEM((H + 2, W + 2, Cin_p), jnp.float32)],
        compiler_params=pltpu.CompilerParams(dimension_semantics=("parallel",)),
    )(x_p, scale_p, shift_p, w_fused)
    return out[..., :Cout]                                   # slice padded classes away (feature-res, cheap)


# ----------------------------------------------------------------------------
# Pallas kernel 2: bilinear upsample (align_corners=False) as two MXU passes.
# Grid iterates over the batch; each step processes all C planes of one image:
#   W pass: one (C*h, w) @ (w, Wo) matmul for every channel at once
#   H pass: per-channel (Ho, h) @ (h, Wo) matmuls
# Output is written directly in NCHW so the full-resolution tensor is never transposed.
# ----------------------------------------------------------------------------
def _bilinear_kernel(x_ref, ah_ref, awt_ref, o_ref):
    _, C, h, w = x_ref.shape
    x = x_ref[0].astype(jnp.float32)                                     # (C, h, w)
    y = jnp.dot(x.reshape(C * h, w), awt_ref[...],
                preferred_element_type=jnp.float32).reshape(C, h, -1)    # (C, h, Wo)
    ah = ah_ref[...]                                                     # (Ho, h)
    for c in range(C):                                                   # C is small (num_classes)
        o_ref[0, c] = jnp.dot(ah, y[c],
                              preferred_element_type=jnp.float32).astype(o_ref.dtype)


def _bilinear_matrix(out_size, in_size):
    """Interpolation matrix matching torch F.interpolate(mode='bilinear', align_corners=False)."""
    scale = in_size / out_size
    i = jnp.arange(out_size, dtype=jnp.float32)
    src = jnp.maximum((i + 0.5) * scale - 0.5, 0.0)
    i0 = jnp.clip(jnp.floor(src).astype(jnp.int32), 0, in_size - 1)
    i1 = jnp.minimum(i0 + 1, in_size - 1)
    w1 = src - i0.astype(jnp.float32)
    w0 = 1.0 - w1
    rows = jnp.arange(out_size)
    A = jnp.zeros((out_size, in_size), jnp.float32)
    A = A.at[rows, i0].add(w0)
    A = A.at[rows, i1].add(w1)
    return A


def bilinear_upsample(x_nchw, size):
    N, C, h, w = x_nchw.shape
    Ho, Wo = size
    ah = _bilinear_matrix(Ho, h)          # (Ho, h)
    awt = _bilinear_matrix(Wo, w).T       # (w, Wo)
    return pl.pallas_call(
        _bilinear_kernel,
        out_shape=jax.ShapeDtypeStruct((N, C, Ho, Wo), jnp.float32),
        grid=(N,),
        in_specs=[
            pl.BlockSpec((1, C, h, w), lambda n: (n, 0, 0, 0)),
            pl.BlockSpec((Ho, h), lambda n: (0, 0)),
            pl.BlockSpec((w, Wo), lambda n: (0, 0)),
        ],
        out_specs=pl.BlockSpec((1, C, Ho, Wo), lambda n: (n, 0, 0, 0)),
        compiler_params=pltpu.CompilerParams(dimension_semantics=("parallel",)),
    )(x_nchw, ah, awt)


# ----------------------------------------------------------------------------
# Deterministic stand-in backbone (the PyTorch module takes `backbone` as an
# external argument).  Plain-JAX glue: 4x4 average pool + 1x1 conv stem.
# Emits features directly in NHWC so no transpose is needed before the conv kernel.
# TODO(synk): real SwiftNet backbone not reproduced; it is an external module.
# ----------------------------------------------------------------------------
def simple_backbone(pyramid, stem_w):
    x = pyramid[0]                                                    # (N, 3, H, W), NCHW pyramid level 0
    N, C, H, W = x.shape
    xp = x.reshape(N, C, H // 4, 4, W // 4, 4).mean(axis=(3, 5))      # (N, 3, H/4, W/4)
    feats = jnp.einsum("nchw,cf->nhwf", xp, stem_w)                   # (N, H/4, W/4, F)  NHWC
    return feats, {}


class SemsegPyramidModelPallas:
    def __init__(self, num_classes, num_features=32, use_bn=True, key=jax.random.PRNGKey(0)):
        assert use_bn, "only the batch_norm=True (bias=False conv) variant is implemented"
        self.num_classes = num_classes
        self.num_features = num_features
        self.has_aux_logits = False
        k_stem, k_conv = jax.random.split(key, 2)

        # backbone stem (stand-in)
        self.stem_w = jax.random.normal(k_stem, (3, num_features), jnp.float32) * 0.1

        # _BNReluConv(num_features, num_classes, k=3): BatchNorm2d (eval stats) folded to scale/shift.
        gamma = 1.0 + 0.01 * jnp.arange(num_features, dtype=jnp.float32)
        beta = 0.01 * jnp.arange(num_features, dtype=jnp.float32)
        running_mean = 0.05 * jnp.sin(jnp.arange(num_features, dtype=jnp.float32))
        running_var = 1.0 + 0.02 * jnp.arange(num_features, dtype=jnp.float32)
        eps = 1e-5
        scale = gamma / jnp.sqrt(running_var + eps)
        shift = beta - running_mean * scale
        self.bn_scale = scale.reshape(1, num_features)
        self.bn_shift = shift.reshape(1, num_features)

        # Conv2d weight, PyTorch OIHW -> (ky*kx, Cin, Cout) taps (padded/fused in the wrapper).
        w_oihw = jax.random.normal(k_conv, (num_classes, num_features, 3, 3), jnp.float32) * 0.05
        self.conv_w_taps = jnp.transpose(w_oihw, (2, 3, 1, 0)).reshape(9, num_features, num_classes)

    def forward(self, pyramid, image_size):
        feats_nhwc, additional = simple_backbone(pyramid, self.stem_w)          # NHWC, feature resolution
        logits_nhwc = bn_relu_conv3x3(feats_nhwc, self.bn_scale, self.bn_shift, self.conv_w_taps)
        logits = jnp.transpose(logits_nhwc, (0, 3, 1, 2))                       # NCHW at feature resolution (small)
        return bilinear_upsample(logits, image_size), additional


if __name__ == "__main__":
    key = jax.random.PRNGKey(0)
    k_img, k_model = jax.random.split(key)

    # small shapes: batch=2, 3-channel 16x16 image, 32 backbone features, 5 classes
    x = jax.random.normal(k_img, (2, 3, 16, 16), jnp.float32)
    pyramid = [x]                     # SwiftNet-style image pyramid; stand-in backbone uses level 0
    image_size = (16, 16)

    model = SemsegPyramidModelPallas(num_classes=5, num_features=32, key=k_model)
    logits_up, additional = model.forward(pyramid, image_size)
    jax.block_until_ready(logits_up)

    assert logits_up.shape == (2, 5, 16, 16), logits_up.shape
    assert logits_up.dtype == jnp.float32
    assert bool(jnp.all(jnp.isfinite(logits_up)))
    assert additional == {}
    print("KERNEL_OK")
</pallas_src>

<mosaic_0001>
module attributes {stable_mosaic.version = 11 : i64} {
  func.func @_bn_relu_conv3x3_kernel(%arg0: i32, %arg1: memref<1x4x4x128xf32, #tpu.memory_space<vmem>>, %arg2: memref<1x128xf32, #tpu.memory_space<vmem>>, %arg3: memref<1x128xf32, #tpu.memory_space<vmem>>, %arg4: memref<1152x128xbf16, #tpu.memory_space<vmem>>, %arg5: memref<1x4x4x128xf32, #tpu.memory_space<vmem>>, %arg6: memref<6x6x128xf32, #tpu.memory_space<vmem>>) attributes {dimension_semantics = [#tpu.dimension_semantics<parallel>], iteration_bounds = array<i64: 2>, scalar_prefetch = 0 : i64, scratch_operands = 1 : i64, tpu.core_type = #tpu.core_type<tc>, window_params = [{transform_indices = @transform_0, window_bounds = array<i64: 1, 4, 4, 128>}, {pipeline_mode = #tpu.pipeline_mode<synchronous>, transform_indices = @transform_1, window_bounds = array<i64: 1, 128>}, {pipeline_mode = #tpu.pipeline_mode<synchronous>, transform_indices = @transform_2, window_bounds = array<i64: 1, 128>}, {pipeline_mode = #tpu.pipeline_mode<synchronous>, transform_indices = @transform_3, window_bounds = array<i64: 1152, 128>}, {transform_indices = @transform_4, window_bounds = array<i64: 1, 4, 4, 128>}]} {
    %cst = arith.constant 0.000000e+00 : f32
    %0 = vector.broadcast %cst : f32 to vector<1x6x128xf32>
    %c0 = arith.constant 0 : index
    %c0_0 = arith.constant 0 : index
    %c0_1 = arith.constant 0 : index
    %1 = vector.load %arg6[%c0, %c0_0, %c0_1] : memref<6x6x128xf32, #tpu.memory_space<vmem>>, vector<1x6x128xf32>
    tpu.vector_store %arg6[%c0, %c0_0, %c0_1], %0 {strides = array<i32>} : memref<6x6x128xf32, #tpu.memory_space<vmem>>, vector<1x6x128xf32>,
    %c5 = arith.constant 5 : index
    %c0_2 = arith.constant 0 : index
    %c0_3 = arith.constant 0 : index
    %2 = vector.load %arg6[%c5, %c0_2, %c0_3] : memref<6x6x128xf32, #tpu.memory_space<vmem>>, vector<1x6x128xf32>
    tpu.vector_store %arg6[%c5, %c0_2, %c0_3], %0 {strides = array<i32>} : memref<6x6x128xf32, #tpu.memory_space<vmem>>, vector<1x6x128xf32>,
    %cst_4 = arith.constant 0.000000e+00 : f32
    %3 = vector.broadcast %cst_4 : f32 to vector<6x1x128xf32>
    %c0_5 = arith.constant 0 : index
    %c0_6 = arith.constant 0 : index
    %c0_7 = arith.constant 0 : index
    %4 = vector.load %arg6[%c0_5, %c0_6, %c0_7] : memref<6x6x128xf32, #tpu.memory_space<vmem>>, vector<6x1x128xf32>
    tpu.vector_store %arg6[%c0_5, %c0_6, %c0_7], %3 {strides = array<i32>} : memref<6x6x128xf32, #tpu.memory_space<vmem>>, vector<6x1x128xf32>,
    %c0_8 = arith.constant 0 : index
    %c5_9 = arith.constant 5 : index
    %c0_10 = arith.constant 0 : index
    %5 = vector.load %arg6[%c0_8, %c5_9, %c0_10] : memref<6x6x128xf32, #tpu.memory_space<vmem>>, vector<6x1x128xf32>
    tpu.vector_store %arg6[%c0_8, %c5_9, %c0_10], %3 {strides = array<i32>} : memref<6x6x128xf32, #tpu.memory_space<vmem>>, vector<6x1x128xf32>,
    %c0_11 = arith.constant 0 : index
    %c0_12 = arith.constant 0 : index
    %c0_13 = arith.constant 0 : index
    %c0_14 = arith.constant 0 : index
    %6 = vector.load %arg1[%c0_11, %c0_12, %c0_13, %c0_14] : memref<1x4x4x128xf32, #tpu.memory_space<vmem>>, vector<1x4x4x128xf32>
    %7 = vector.shape_cast %6 : vector<1x4x4x128xf32> to vector<4x4x128xf32>
    %c0_15 = arith.constant 0 : index
    %c0_16 = arith.constant 0 : index
    %8 = vector.load %arg2[%c0_15, %c0_16] : memref<1x128xf32, #tpu.memory_space<vmem>>, vector<1x128xf32>
    %9 = vector.shape_cast %8 : vector<1x128xf32> to vector<1x1x128xf32>
    %c0_17 = arith.constant 0 : index
    %c0_18 = arith.constant 0 : index
    %10 = vector.load %arg3[%c0_17, %c0_18] : memref<1x128xf32, #tpu.memory_space<vmem>>, vector<1x128xf32>
    %11 = vector.shape_cast %10 : vector<1x128xf32> to vector<1x1x128xf32>
    %12 = vector.broadcast %9 : vector<1x1x128xf32> to vector<4x4x128xf32>
    %13 = arith.mulf %7, %12 : vector<4x4x128xf32>
    %14 = vector.broadcast %11 : vector<1x1x128xf32> to vector<4x4x128xf32>
    %15 = arith.addf %13, %14 : vector<4x4x128xf32>
    %cst_19 = arith.constant 0.000000e+00 : f32
    %16 = vector.broadcast %cst_19 : f32 to vector<4x4x128xf32>
    %17 = arith.maximumf %15, %16 : vector<4x4x128xf32>
    %c1 = arith.constant 1 : index
    %c1_20 = arith.constant 1 : index
    %c0_21 = arith.constant 0 : index
    %18 = vector.load %arg6[%c1, %c1_20, %c0_21] : memref<6x6x128xf32, #tpu.memory_space<vmem>>, vector<4x4x128xf32>
    tpu.vector_store %arg6[%c1, %c1_20, %c0_21], %17 {strides = array<i32>} : memref<6x6x128xf32, #tpu.memory_space<vmem>>, vector<4x4x128xf32>,
    %c0_22 = arith.constant 0 : index
    %c0_23 = arith.constant 0 : index
    %c0_24 = arith.constant 0 : index
    %19 = vector.load %arg6[%c0_22, %c0_23, %c0_24] : memref<6x6x128xf32, #tpu.memory_space<vmem>>, vector<4x4x128xf32>
    %20 = vector.shape_cast %19 : vector<4x4x128xf32> to vector<16x128xf32>
    %c0_25 = arith.constant 0 : index
    %c1_26 = arith.constant 1 : index
    %c0_27 = arith.constant 0 : index
    %21 = vector.load %arg6[%c0_25, %c1_26, %c0_27] : memref<6x6x128xf32, #tpu.memory_space<vmem>>, vector<4x4x128xf32>
    %22 = vector.shape_cast %21 : vector<4x4x128xf32> to vector<16x128xf32>
    %c0_28 = arith.constant 0 : index
    %c2 = arith.constant 2 : index
    %c0_29 = arith.constant 0 : index
    %23 = vector.load %arg6[%c0_28, %c2, %c0_29] : memref<6x6x128xf32, #tpu.memory_space<vmem>>, vector<4x4x128xf32>
    %24 = vector.shape_cast %23 : vector<4x4x128xf32> to vector<16x128xf32>
    %c1_30 = arith.constant 1 : index
    %c0_31 = arith.constant 0 : index
    %c0_32 = arith.constant 0 : index
    %25 = vector.load %arg6[%c1_30, %c0_31, %c0_32] : memref<6x6x128xf32, #tpu.memory_space<vmem>>, vector<4x4x128xf32>
    %26 = vector.shape_cast %25 : vector<4x4x128xf32> to vector<16x128xf32>
    %c1_33 = arith.constant 1 : index
    %c1_34 = arith.constant 1 : index
    %c0_35 = arith.constant 0 : index
    %27 = vector.load %arg6[%c1_33, %c1_34, %c0_35] : memref<6x6x128xf32, #tpu.memory_space<vmem>>, vector<4x4x128xf32>
    %28 = vector.shape_cast %27 : vector<4x4x128xf32> to vector<16x128xf32>
    %c1_36 = arith.constant 1 : index
    %c2_37 = arith.constant 2 : index
    %c0_38 = arith.constant 0 : index
    %29 = vector.load %arg6[%c1_36, %c2_37, %c0_38] : memref<6x6x128xf32, #tpu.memory_space<vmem>>, vector<4x4x128xf32>
    %30 = vector.shape_cast %29 : vector<4x4x128xf32> to vector<16x128xf32>
    %c2_39 = arith.constant 2 : index
    %c0_40 = arith.constant 0 : index
    %c0_41 = arith.constant 0 : index
    %31 = vector.load %arg6[%c2_39, %c0_40, %c0_41] : memref<6x6x128xf32, #tpu.memory_space<vmem>>, vector<4x4x128xf32>
    %32 = vector.shape_cast %31 : vector<4x4x128xf32> to vector<16x128xf32>
    %c2_42 = arith.constant 2 : index
    %c1_43 = arith.constant 1 : index
    %c0_44 = arith.constant 0 : index
    %33 = vector.load %arg6[%c2_42, %c1_43, %c0_44] : memref<6x6x128xf32, #tpu.memory_space<vmem>>, vector<4x4x128xf32>
    %34 = vector.shape_cast %33 : vector<4x4x128xf32> to vector<16x128xf32>
    %c2_45 = arith.constant 2 : index
    %c2_46 = arith.constant 2 : index
    %c0_47 = arith.constant 0 : index
    %35 = vector.load %arg6[%c2_45, %c2_46, %c0_47] : memref<6x6x128xf32, #tpu.memory_space<vmem>>, vector<4x4x128xf32>
    %36 = vector.shape_cast %35 : vector<4x4x128xf32> to vector<16x128xf32>
    %37 = tpu.concatenate %20, %22, %24, %26, %28, %30, %32, %34, %36 in 1 : vector<16x128xf32>, vector<16x128xf32>, vector<16x128xf32>, vector<16x128xf32>, vector<16x128xf32>, vector<16x128xf32>, vector<16x128xf32>, vector<16x128xf32>, vector<16x128xf32> -> vector<16x1152xf32>
    %38 = arith.truncf %37 : vector<16x1152xf32> to vector<16x1152xbf16>
    %c0_48 = arith.constant 0 : index
    %c0_49 = arith.constant 0 : index
    %39 = vector.load %arg4[%c0_48, %c0_49] : memref<1152x128xbf16, #tpu.memory_space<vmem>>, vector<1152x128xbf16>
    %cst_50 = arith.constant dense<0.000000e+00> : vector<16x128xf32>
    %40 = tpu.matmul %38, %39, %cst_50 {dimension_numbers = #tpu.dot_dimension_numbers<[1], [0], [0], [1], [0, 0, 1, 1], [], []>} : vector<16x1152xbf16>, vector<1152x128xbf16>, vector<16x128xf32> -> vector<16x128xf32>
    %41 = vector.shape_cast %40 : vector<16x128xf32> to vector<4x4x128xf32>
    %c0_51 = arith.constant 0 : index
    %c0_52 = arith.constant 0 : index
    %c0_53 = arith.constant 0 : index
    %c0_54 = arith.constant 0 : index
    %42 = vector.load %arg5[%c0_51, %c0_52, %c0_53, %c0_54] : memref<1x4x4x128xf32, #tpu.memory_space<vmem>>, vector<1x4x4x128xf32>
    %43 = vector.shape_cast %42 : vector<1x4x4x128xf32> to vector<4x4x128xf32>
    %44 = vector.shape_cast %41 : vector<4x4x128xf32> to vector<1x4x4x128xf32>
    tpu.vector_store %arg5[%c0_51, %c0_52, %c0_53, %c0_54], %44 {strides = array<i32>} : memref<1x4x4x128xf32, #tpu.memory_space<vmem>>, vector<1x4x4x128xf32>,
    return
  }
  func.func @transform_0(%arg0: i32) -> (i32, i32, i32, i32) {
    %c0_i32 = arith.constant 0 : i32
    %c0_i32_0 = arith.constant 0 : i32
    %c0_i32_1 = arith.constant 0 : i32
    %c0_i32_2 = arith.constant 0 : i32
    return %arg0, %c0_i32, %c0_i32_0, %c0_i32_1 : i32, i32, i32, i32
  }
  func.func @transform_1(%arg0: i32) -> (i32, i32) {
    %c0_i32 = arith.constant 0 : i32
    %c0_i32_0 = arith.constant 0 : i32
    %c0_i32_1 = arith.constant 0 : i32
    return %c0_i32, %c0_i32_0 : i32, i32
  }
  func.func @transform_2(%arg0: i32) -> (i32, i32) {
    %c0_i32 = arith.constant 0 : i32
    %c0_i32_0 = arith.constant 0 : i32
    %c0_i32_1 = arith.constant 0 : i32
    return %c0_i32, %c0_i32_0 : i32, i32
  }
  func.func @transform_3(%arg0: i32) -> (i32, i32) {
    %c0_i32 = arith.constant 0 : i32
    %c0_i32_0 = arith.constant 0 : i32
    %c0_i32_1 = arith.constant 0 : i32
    return %c0_i32, %c0_i32_0 : i32, i32
  }
  func.func @transform_4(%arg0: i32) -> (i32, i32, i32, i32) {
    %c0_i32 = arith.constant 0 : i32
    %c0_i32_0 = arith.constant 0 : i32
    %c0_i32_1 = arith.constant 0 : i32
    %c0_i32_2 = arith.constant 0 : i32
    return %arg0, %c0_i32, %c0_i32_0, %c0_i32_1 : i32, i32, i32, i32
  }
}

</mosaic_0001>

<llo_original>
// kernel: tpu_custom_call.1
$region0: #{tpu_custom_call.1}
  #allocation0 [shape = 'u32[]', space=smem, size = 0x4, offset = 0x4, fixed_abs, tag = 'smem constant byte address 0x4 - core index']
  #allocation1 [shape = 'u32[144,128]{1,0:T(1,128)}', space=vmem, size = 0x12000, scoped, tag = 'internal scratch']
  #allocation2 [shape = 'f32[6,6,128]{2,1,0:T(8,128)}', space=vmem, size = 0x6000, scoped, tag = 'scratch operand']
  %s0 = inlined_call_operand.hbm [shape: f32[2,4,4,128], index: 0, kind: input, shape index: {}]
  %s1 = inlined_call_operand.vmem [shape: f32[1,128], index: 1, kind: input, shape index: {}]
  %s2 = inlined_call_operand.vmem [shape: f32[1,128], index: 2, kind: input, shape index: {}]
  %s3 = inlined_call_operand.hbm [shape: bf16[1152,128], index: 3, kind: input, shape index: {}]
  %s4 = inlined_call_operand.hbm [shape: f32[2,4,4,128], index: 4, kind: output, shape index: {}]
  %s5 = sld [smem:[#allocation0]]
  $region57: #{tpu_custom_call.1} parent=0
    _
  %s7 = ssub.s32 1, %s5
  %s8 = scalar_select 0, %s7, %s5
  $region1: #{tpu_custom_call.1} parent=0
    #allocation3 [shape = 'u8[16384]{0}', space=vmem, size = 0x4000, scoped, tag = 'input window, operand 0']
    #allocation4 [shape = 's32[2]{0}', space=sflag, size = 0x8, scoped, tag = 'scoped memory for tpu_custom_call.1']
    #allocation5 [shape = 's32[2]{0}', space=sflag, size = 0x8, scoped, tag = 'scoped memory for tpu_custom_call.1']
    #allocation6 [shape = 'u8[294912]{0}', space=vmem, size = 0x48000, scoped, tag = 'input window, operand 3, single buffered']
    #allocation7 [shape = 's32[1]{0}', space=sflag, size = 0x4, scoped, tag = 'scoped memory for tpu_custom_call.1']
    #allocation8 [shape = 'u8[16384]{0}', space=vmem, size = 0x4000, scoped, tag = 'output window, operand 0']
    %9 = vsyncpa [#allocation4], 0
    %s10 = scalar_lea.sflag [#allocation4], 1
    %11 = vsyncpa %s10, 0
    %12 = vsyncpa [#allocation7], 0
    %13 = vsyncpa [#allocation5], 0
    %s14 = scalar_lea.sflag [#allocation5], 1
    %15 = vsyncpa %s14, 0
    loop: start=0, step=1, limit=4
    $region2: #{tpu_custom_call.1} parent=1 // loop_pre_header
      _
    $region3: #{tpu_custom_call.1} parent=1 // loop_header
      %s17 = sphi 0, %s21
      %p18 = scmp.ge.s32.totalorder %s17, 4
      %s27 = sphi 0, %s29
      %s30 = sphi 0, %s27
      %s31 = sphi 0, %s30
      %s47 = sphi 0, %s31
      %s51 = sphi 0, %s51
      %s53 = sphi 0, %s51
      %s54 = sphi 0, %s53
      %s68 = sphi 0, %s54
      %s72 = sphi 0, %s72
      %s74 = sphi 0, %s72
      %s75 = sphi 0, %s74
      %s89 = sphi 0, %s75
      %s93 = sphi 0, %s93
      %s95 = sphi 0, %s93
      %s96 = sphi 0, %s95
      %s110 = sphi 0, %s96
      %s116 = sphi 0, %s118
      %s119 = sphi 0, %s116
      %s120 = sphi 0, %s119
      %s136 = sphi 0, %s120
    $region4: #{tpu_custom_call.1} parent=1 // loop_header_branch
      %20 = sbr.rel (%p18) target = $region8
    $region5: #{tpu_custom_call.1} parent=1 // loop_body
      %s22 = ssub.s32 %s17, 1
      %s23 = ssub.s32 %s17, 2
      %s24 = sadd.s32 %s17, 1
      %s25 = ssub.s32 %s17, %s24
      %p26 = scmp.eq.s32.totalorder %s25, 0
      %s28 = sadd.s32 %s27, 1
      %s29 = scalar_select %p26, %s27, %s28
      %p32 = pneg %p26
      %p33 = scmp.eq.s32.totalorder %s17, 1
      %p34 = por %p32, %p33
      %p35 = scmp.ne.s32.totalorder %s27, %s30
      %p36 = scmp.eq.s32.totalorder %s17, 0
      %p37 = por %p35, %p36
      %p38 = scmp.ne.s32.totalorder %s27, %s30
      %p39 = scmp.eq.s32.totalorder %s22, 1
      %p40 = por %p38, %p39
      %p41 = scmp.ne.s32.totalorder %s30, %s31
      %p42 = scmp.eq.s32.totalorder %s22, 0
      %p43 = por %p41, %p42
      %p44 = scmp.ne.s32.totalorder %s30, %s31
      %p45 = scmp.eq.s32.totalorder %s23, 1
      %p46 = por %p44, %p45
      %p48 = scmp.ne.s32.totalorder %s31, %s47
      %p49 = scmp.eq.s32.totalorder %s23, 0
      %p50 = por %p48, %p49
      %s52 = sadd.s32 %s51, 1
      %p55 = scmp.eq.s32.totalorder %s17, 1
      %p56 = scmp.ne.s32.totalorder %s51, %s53
      %p57 = scmp.eq.s32.totalorder %s17, 0
      %p58 = por %p56, %p57
      %p59 = scmp.ne.s32.totalorder %s51, %s53
      %p60 = scmp.eq.s32.totalorder %s22, 1
      %p61 = por %p59, %p60
      %p62 = scmp.ne.s32.totalorder %s53, %s54
      %p63 = scmp.eq.s32.totalorder %s22, 0
      %p64 = por %p62, %p63
      %p65 = scmp.ne.s32.totalorder %s53, %s54
      %p66 = scmp.eq.s32.totalorder %s23, 1
      %p67 = por %p65, %p66
      %p69 = scmp.ne.s32.totalorder %s54, %s68
      %p70 = scmp.eq.s32.totalorder %s23, 0
      %p71 = por %p69, %p70
      %s73 = sadd.s32 %s72, 1
      %p76 = scmp.eq.s32.totalorder %s17, 1
      %p77 = scmp.ne.s32.totalorder %s72, %s74
      %p78 = scmp.eq.s32.totalorder %s17, 0
      %p79 = por %p77, %p78
      %p80 = scmp.ne.s32.totalorder %s72, %s74
      %p81 = scmp.eq.s32.totalorder %s22, 1
      %p82 = por %p80, %p81
      %p83 = scmp.ne.s32.totalorder %s74, %s75
      %p84 = scmp.eq.s32.totalorder %s22, 0
      %p85 = por %p83, %p84
      %p86 = scmp.ne.s32.totalorder %s74, %s75
      %p87 = scmp.eq.s32.totalorder %s23, 1
      %p88 = por %p86, %p87
      %p90 = scmp.ne.s32.totalorder %s75, %s89
      %p91 = scmp.eq.s32.totalorder %s23, 0
      %p92 = por %p90, %p91
      %s94 = sadd.s32 %s93, 1
      %p97 = scmp.eq.s32.totalorder %s17, 1
      %p98 = scmp.ne.s32.totalorder %s93, %s95
      %p99 = scmp.eq.s32.totalorder %s17, 0
      %p100 = por %p98, %p99
      %p101 = scmp.ne.s32.totalorder %s93, %s95
      %p102 = scmp.eq.s32.totalorder %s22, 1
      %p103 = por %p101, %p102
      %p104 = scmp.ne.s32.totalorder %s95, %s96
      %p105 = scmp.eq.s32.totalorder %s22, 0
      %p106 = por %p104, %p105
      %p107 = scmp.ne.s32.totalorder %s95, %s96
      %p108 = scmp.eq.s32.totalorder %s23, 1
      %p109 = por %p107, %p108
      %p111 = scmp.ne.s32.totalorder %s96, %s110
      %p112 = scmp.eq.s32.totalorder %s23, 0
      %p113 = por %p111, %p112
      %s114 = ssub.s32 %s17, %s24
      %p115 = scmp.eq.s32.totalorder %s114, 0
      %s117 = sadd.s32 %s116, 1
      %s118 = scalar_select %p115, %s116, %s117
      %p121 = pneg %p115
      %p122 = scmp.eq.s32.totalorder %s17, 1
      %p123 = por %p121, %p122
      %p124 = scmp.ne.s32.totalorder %s116, %s119
      %p125 = scmp.eq.s32.totalorder %s17, 0
      %p126 = por %p124, %p125
      %p127 = scmp.ne.s32.totalorder %s116, %s119
      %p128 = scmp.eq.s32.totalorder %s22, 1
      %p129 = por %p127, %p128
      %p130 = scmp.ne.s32.totalorder %s119, %s120
      %p131 = scmp.eq.s32.totalorder %s22, 0
      %p132 = por %p130, %p131
      %p133 = scmp.ne.s32.totalorder %s119, %s120
      %p134 = scmp.eq.s32.totalorder %s23, 1
      %p135 = por %p133, %p134
      %p137 = scmp.ne.s32.totalorder %s120, %s136
      %p138 = scmp.eq.s32.totalorder %s23, 0
      %p139 = por %p137, %p138
      %p140 = scmp.le.s32.totalorder 1, %s17
      %p141 = scmp.lt.s32.totalorder %s17, 3
      %p142 = pnand %p140, %p141
      %p143 = pneg %p142
      // Predicated region
      $region9: #{tpu_custom_call.1} parent=5 // pred_check
        _
      $region10: #{tpu_custom_call.1} parent=5 // pred_check_branch
        %145 = sbr.rel (%p142) target = $region12
      $region11: #{tpu_custom_call.1} parent=5 // pred_region
        %s146 = ssub.s32 %s17, 1
        // Predicated region
        $region13: #{tpu_custom_call.1} parent=11 // pred_check
          %p147 = pneg %p64
        $region14: #{tpu_custom_call.1} parent=11 // pred_check_branch
          %149 = sbr.rel (%p147) target = $region16
        $region15: #{tpu_custom_call.1} parent=11 // pred_region
          _
        $region16: #{tpu_custom_call.1} parent=11 // pred_fallthru
          _
        // Predicated region
        $region17: #{tpu_custom_call.1} parent=11 // pred_check
          %p150 = pneg %p85
        $region18: #{tpu_custom_call.1} parent=11 // pred_check_branch
          %152 = sbr.rel (%p150) target = $region20
        $region19: #{tpu_custom_call.1} parent=11 // pred_region
          _
        $region20: #{tpu_custom_call.1} parent=11 // pred_fallthru
          _
        // Predicated region
        $region21: #{tpu_custom_call.1} parent=11 // pred_check
          %p153 = pneg %p106
        $region22: #{tpu_custom_call.1} parent=11 // pred_check_branch
          %155 = sbr.rel (%p153) target = $region24
        $region23: #{tpu_custom_call.1} parent=11 // pred_region
          %s157 = ssub.s32 9216, 9216
          %158 = vsyncadd [#allocation7], %s157
          %s159 = sshll.u32 [#allocation6], 4
          %s160 = int_to_ptr.vmem [resolvable:$true] %s159
          %165 = dma.hbm_to_vmem [thread:$0]  %s3, 9216, %s160, [#allocation7], 64, 64, 4
        $region24: #{tpu_custom_call.1} parent=11 // pred_fallthru
          _
      $region12: #{tpu_custom_call.1} parent=5 // pred_fallthru
        _
      %p166 = scmp.lt.s32.totalorder %s17, 2
      // Predicated region
      $region25: #{tpu_custom_call.1} parent=5 // pred_check
        %p167 = pneg %p166
      $region26: #{tpu_custom_call.1} parent=5 // pred_check_branch
        %169 = sbr.rel (%p167) target = $region28
      $region27: #{tpu_custom_call.1} parent=5 // pred_region
        // Predicated region
        $region29: #{tpu_custom_call.1} parent=27 // pred_check
          %p170 = pneg %p37
        $region30: #{tpu_custom_call.1} parent=27 // pred_check_branch
          %172 = sbr.rel (%p170) target = $region32
        $region31: #{tpu_custom_call.1} parent=27 // pred_region
          %s173 = sand.u32 %s27, 1
          %s174 = scalar_lea.sflag [#allocation4], %s173
          %s175 = sand.u32 %s27, 1
          %s176 = smul.addr %s175, 16
          %s177 = scalar_lea.vmem [#allocation3], %s176
          %s179 = ssub.s32 256, 256
          %180 = vsyncadd %s174, %s179
          %s181 = smul.addr %s17, 4
          %s182 = smul.addr %s181, 64
          %s183 = scalar_lea.hbm %s0, %s182
          %s184 = sshll.u32 %s177, 4
          %s185 = int_to_ptr.vmem [resolvable:$true] %s184
          %190 = dma.hbm_to_vmem [thread:$0]  %s183, 256, %s185, %s174, 64, 64, 4
        $region32: #{tpu_custom_call.1} parent=27 // pred_fallthru
          _
      $region28: #{tpu_custom_call.1} parent=5 // pred_fallthru
        _
      %p191 = scmp.le.s32.totalorder 1, %s17
      %p192 = scmp.lt.s32.totalorder %s17, 3
      %p193 = pnand %p191, %p192
      %p194 = pneg %p193
      // Predicated region
      $region33: #{tpu_custom_call.1} parent=5 // pred_check
        _
      $region34: #{tpu_custom_call.1} parent=5 // pred_check_branch
        %196 = sbr.rel (%p193) target = $region36
      $region35: #{tpu_custom_call.1} parent=5 // pred_region
        %s197 = ssub.s32 %s17, 1
        %s198 = sand.u32 %s30, 1
        %s199 = scalar_lea.sflag [#allocation4], %s198
        %s200 = sand.u32 %s30, 1
        %s201 = smul.addr %s200, 16
        %s202 = scalar_lea.vmem [#allocation3], %s201
        // Predicated region
        $region37: #{tpu_custom_call.1} parent=35 // pred_check
          %p203 = pneg %p43
        $region38: #{tpu_custom_call.1} parent=35 // pred_check_branch
          %205 = sbr.rel (%p203) target = $region40
        $region39: #{tpu_custom_call.1} parent=35 // pred_region
          %206 = dma.done %s199, 256
        $region40: #{tpu_custom_call.1} parent=35 // pred_fallthru
          _
        // Predicated region
        $region41: #{tpu_custom_call.1} parent=35 // pred_check
          %p207 = pneg %p106
        $region42: #{tpu_custom_call.1} parent=35 // pred_check_branch
          %209 = sbr.rel (%p207) target = $region44
        $region43: #{tpu_custom_call.1} parent=35 // pred_region
          %210 = dma.done [#allocation7], 9216
        $region44: #{tpu_custom_call.1} parent=35 // pred_fallthru
          _
        %s211 = sand.u32 %s30, 1
        %s212 = scalar_lea.sflag [#allocation4], %s211
        %s213 = sand.u32 %s30, 1
        %s214 = smul.addr %s213, 16
        %s215 = scalar_lea.vmem [#allocation3], %s214
        %p216 = pneg %p43
        %p217 = pneg %p40
        %p218 = pneg %p64
        %p219 = pneg %p61
        %p220 = pneg %p85
        %p221 = pneg %p82
        %p222 = pneg %p106
        %p223 = pneg %p103
        %p224 = pneg %p132
        %p225 = pneg %p129
        %s226 = sand.u32 %s119, 1
        %s227 = scalar_lea.sflag [#allocation5], %s226
        %s228 = sand.u32 %s119, 1
        %s229 = smul.addr %s228, 16
        %s230 = scalar_lea.vmem [#allocation8], %s229
        %232 = vst [vmem:[#allocation2] sm:$0x3f] 0.0
        %s233 = scalar_lea.vmem [#allocation2], 40
        %234 = vst [vmem:[%s233] sm:$0x3f] 0.0
        %235 = vst [vmem:[#allocation2] sm:$0x1] 0.0
        %236 = vst [vmem:[#allocation2 + $0x8] sm:$0x1] 0.0
        %237 = vst [vmem:[#allocation2 + $0x10] sm:$0x1] 0.0
        %238 = vst [vmem:[#allocation2 + $0x18] sm:$0x1] 0.0
        %239 = vst [vmem:[#allocation2 + $0x20] sm:$0x1] 0.0
        %240 = vst [vmem:[#allocation2 + $0x28] sm:$0x1] 0.0
        %241 = vst [vmem:[#allocation2 + $0x5] sm:$0x1] 0.0
        %242 = vst [vmem:[#allocation2 + $0xd] sm:$0x1] 0.0
        %243 = vst [vmem:[#allocation2 + $0x15] sm:$0x1] 0.0
        %244 = vst [vmem:[#allocation2 + $0x1d] sm:$0x1] 0.0
        %245 = vst [vmem:[#allocation2 + $0x25] sm:$0x1] 0.0
        %246 = vst [vmem:[#allocation2 + $0x2d] sm:$0x1] 0.0
        %v247 = vld [vmem:[%s202] sm:$0xf]
        %v248 = vld [vmem:[%s202 + $0x4] sm:$0xf]
        %v249 = vld [vmem:[%s202 + $0x8] sm:$0xf]
        %v250 = vld [vmem:[%s202 + $0xc] sm:$0xf]
        %v251 = vld [vmem:[%s1] sm:$0x1]
        %v252 = vld [vmem:[%s2] sm:$0x1]
        %v254 = vlaneseq
        %v255 = vshrl.u32 %v254, 7
        %v256 = vsub.s32 0, %v255
        %v257 = vrot.slane %v251, %v256
        %v259 = vmul.f32 %v247, %v257
        %v260 = vmul.f32 %v248, %v257
        %v261 = vmul.f32 %v249, %v257
        %v262 = vmul.f32 %v250, %v257
        %v264 = vlaneseq
        %v265 = vshrl.u32 %v264, 7
        %v266 = vsub.s32 0, %v265
        %v267 = vrot.slane %v252, %v266
        %v269 = vadd.f32 %v259, %v267
        %v270 = vadd.f32 %v260, %v267
        %v271 = vadd.f32 %v261, %v267
        %v272 = vadd.f32 %v262, %v267
        %v273 = vmax.f32 %v269, 0.0
        %v274 = vmax.f32 %v270, 0.0
        %v275 = vmax.f32 %v271, 0.0
        %v276 = vmax.f32 %v272, 0.0
        %s277 = scalar_lea.vmem [#allocation2], 8
        %278 = vst [vmem:[%s277 + $0x1] sm:$0xf] %v273
        %279 = vst [vmem:[%s277 + $0x9] sm:$0xf] %v274
        %280 = vst [vmem:[%s277 + $0x11] sm:$0xf] %v275
        %281 = vst [vmem:[%s277 + $0x19] sm:$0xf] %v276
        %v282 = vld [vmem:[#allocation2] sm:$0xf]
        %v283 = vld [vmem:[#allocation2 + $0x8] sm:$0xf]
        %v284 = vld [vmem:[#allocation2 + $0x10] sm:$0xf]
        %v285 = vld [vmem:[#allocation2 + $0x18] sm:$0xf]
        %v286 = vld [vmem:[#allocation2 + $0x1] sm:$0xf]
        %v287 = vld [vmem:[#allocation2 + $0x9] sm:$0xf]
        %v288 = vld [vmem:[#allocation2 + $0x11] sm:$0xf]
        %v289 = vld [vmem:[#allocation2 + $0x19] sm:$0xf]
        %v290 = vld [vmem:[#allocation2 + $0x2] sm:$0xf]
        %v291 = vld [vmem:[#allocation2 + $0xa] sm:$0xf]
        %v292 = vld [vmem:[#allocation2 + $0x12] sm:$0xf]
        %v293 = vld [vmem:[#allocation2 + $0x1a] sm:$0xf]
        %v294 = vld [vmem:[%s277] sm:$0xf]
        %v295 = vld [vmem:[%s277 + $0x8] sm:$0xf]
        %v296 = vld [vmem:[%s277 + $0x10] sm:$0xf]
        %v297 = vld [vmem:[%s277 + $0x18] sm:$0xf]
        %v298 = vld [vmem:[%s277 + $0x1] sm:$0xf]
        %v299 = vld [vmem:[%s277 + $0x9] sm:$0xf]
        %v300 = vld [vmem:[%s277 + $0x11] sm:$0xf]
        %v301 = vld [vmem:[%s277 + $0x19] sm:$0xf]
        %v302 = vld [vmem:[%s277 + $0x2] sm:$0xf]
        %v303 = vld [vmem:[%s277 + $0xa] sm:$0xf]
        %v304 = vld [vmem:[%s277 + $0x12] sm:$0xf]
        %v305 = vld [vmem:[%s277 + $0x1a] sm:$0xf]
        %s306 = scalar_lea.vmem [#allocation2], 16
        %v307 = vld [vmem:[%s306] sm:$0xf]
        %v308 = vld [vmem:[%s306 + $0x8] sm:$0xf]
        %v309 = vld [vmem:[%s306 + $0x10] sm:$0xf]
        %v310 = vld [vmem:[%s306 + $0x18] sm:$0xf]
        %v311 = vld [vmem:[%s306 + $0x1] sm:$0xf]
        %v312 = vld [vmem:[%s306 + $0x9] sm:$0xf]
        %v313 = vld [vmem:[%s306 + $0x11] sm:$0xf]
        %v314 = vld [vmem:[%s306 + $0x19] sm:$0xf]
        %v315 = vld [vmem:[%s306 + $0x2] sm:$0xf]
        %v316 = vld [vmem:[%s306 + $0xa] sm:$0xf]
        %v317 = vld [vmem:[%s306 + $0x12] sm:$0xf]
        %v318 = vld [vmem:[%s306 + $0x1a] sm:$0xf]
        %v323 = vcombine.low %v282, %v283
        %v324 = vcombine.low %v284, %v285
        %v331 = vcombine.low %v286, %v287
        %v332 = vcombine.low %v288, %v289
        %v339 = vcombine.low %v290, %v291
        %v340 = vcombine.low %v292, %v293
        %v347 = vcombine.low %v294, %v295
        %v348 = vcombine.low %v296, %v297
        %v355 = vcombine.low %v298, %v299
        %v356 = vcombine.low %v300, %v301
        %v363 = vcombine.low %v302, %v303
        %v364 = vcombine.low %v304, %v305
        %v371 = vcombine.low %v307, %v308
        %v372 = vcombine.low %v309, %v310
        %v379 = vcombine.low %v311, %v312
        %v380 = vcombine.low %v313, %v314
        %v387 = vcombine.low %v315, %v316
        %v388 = vcombine.low %v317, %v318
        %v391 = vpack.c.bf16 %v324, %v323
        %v392 = vpack.c.bf16 %v332, %v331
        %v393 = vpack.c.bf16 %v340, %v339
        %v394 = vpack.c.bf16 %v348, %v347
        %v395 = vpack.c.bf16 %v356, %v355
        %v396 = vpack.c.bf16 %v364, %v363
        %v397 = vpack.c.bf16 %v372, %v371
        %v398 = vpack.c.bf16 %v380, %v379
        %v399 = vpack.c.bf16 %v388, %v387
        %v400 = vld [vmem:[#allocation6] sm:$0xf]
        %v401 = vld [vmem:[#allocation6 + $0x4] sm:$0xf]
        %v402 = vld [vmem:[#allocation6 + $0x8] sm:$0xf]
        %v403 = vld [vmem:[#allocation6 + $0xc] sm:$0xf]
        %v404 = vld [vmem:[#allocation6 + $0x10] sm:$0xf]
        %v405 = vld [vmem:[#allocation6 + $0x14] sm:$0xf]
        %v406 = vld [vmem:[#allocation6 + $0x18] sm:$0xf]
        %v407 = vld [vmem:[#allocation6 + $0x1c] sm:$0xf]
        %v408 = vld [vmem:[#allocation6 + $0x20] sm:$0xf]
        %v409 = vld [vmem:[#allocation6 + $0x24] sm:$0xf]
        %v410 = vld [vmem:[#allocation6 + $0x28] sm:$0xf]
        %v411 = vld [vmem:[#allocation6 + $0x2c] sm:$0xf]
        %v412 = vld [vmem:[#allocation6 + $0x30] sm:$0xf]
        %v413 = vld [vmem:[#allocation6 + $0x34] sm:$0xf]
        %v414 = vld [vmem:[#allocation6 + $0x38] sm:$0xf]
        %v415 = vld [vmem:[#allocation6 + $0x3c] sm:$0xf]
        %v416 = vld [vmem:[#allocation6 + $0x40] sm:$0xf]
        %v417 = vld [vmem:[#allocation6 + $0x44] sm:$0xf]
        %v418 = vld [vmem:[#allocation6 + $0x48] sm:$0xf]
        %v419 = vld [vmem:[#allocation6 + $0x4c] sm:$0xf]
        %v420 = vld [vmem:[#allocation6 + $0x50] sm:$0xf]
        %v421 = vld [vmem:[#allocation6 + $0x54] sm:$0xf]
        %v422 = vld [vmem:[#allocation6 + $0x58] sm:$0xf]
        %v423 = vld [vmem:[#allocation6 + $0x5c] sm:$0xf]
        %v424 = vld [vmem:[#allocation6 + $0x60] sm:$0xf]
        %v425 = vld [vmem:[#allocation6 + $0x64] sm:$0xf]
        %v426 = vld [vmem:[#allocation6 + $0x68] sm:$0xf]
        %v427 = vld [vmem:[#allocation6 + $0x6c] sm:$0xf]
        %v428 = vld [vmem:[#allocation6 + $0x70] sm:$0xf]
        %v429 = vld [vmem:[#allocation6 + $0x74] sm:$0xf]
        %v430 = vld [vmem:[#allocation6 + $0x78] sm:$0xf]
        %v431 = vld [vmem:[#allocation6 + $0x7c] sm:$0xf]
        %v432 = vld [vmem:[#allocation6 + $0x80] sm:$0xf]
        %v433 = vld [vmem:[#allocation6 + $0x84] sm:$0xf]
        %v434 = vld [vmem:[#allocation6 + $0x88] sm:$0xf]
        %v435 = vld [vmem:[#allocation6 + $0x8c] sm:$0xf]
        %v436 = vld [vmem:[#allocation6 + $0x90] sm:$0xf]
        %v437 = vld [vmem:[#allocation6 + $0x94] sm:$0xf]
        %v438 = vld [vmem:[#allocation6 + $0x98] sm:$0xf]
        %v439 = vld [vmem:[#allocation6 + $0x9c] sm:$0xf]
        %v440 = vld [vmem:[#allocation6 + $0xa0] sm:$0xf]
        %v441 = vld [vmem:[#allocation6 + $0xa4] sm:$0xf]
        %v442 = vld [vmem:[#allocation6 + $0xa8] sm:$0xf]
        %v443 = vld [vmem:[#allocation6 + $0xac] sm:$0xf]
        %v444 = vld [vmem:[#allocation6 + $0xb0] sm:$0xf]
        %v445 = vld [vmem:[#allocation6 + $0xb4] sm:$0xf]
        %v446 = vld [vmem:[#allocation6 + $0xb8] sm:$0xf]
        %v447 = vld [vmem:[#allocation6 + $0xbc] sm:$0xf]
        %v448 = vld [vmem:[#allocation6 + $0xc0] sm:$0xf]
        %v449 = vld [vmem:[#allocation6 + $0xc4] sm:$0xf]
        %v450 = vld [vmem:[#allocation6 + $0xc8] sm:$0xf]
        %v451 = vld [vmem:[#allocation6 + $0xcc] sm:$0xf]
        %v452 = vld [vmem:[#allocation6 + $0xd0] sm:$0xf]
        %v453 = vld [vmem:[#allocation6 + $0xd4] sm:$0xf]
        %v454 = vld [vmem:[#allocation6 + $0xd8] sm:$0xf]
        %v455 = vld [vmem:[#allocation6 + $0xdc] sm:$0xf]
        %v456 = vld [vmem:[#allocation6 + $0xe0] sm:$0xf]
        %v457 = vld [vmem:[#allocation6 + $0xe4] sm:$0xf]
        %v458 = vld [vmem:[#allocation6 + $0xe8] sm:$0xf]
        %v459 = vld [vmem:[#allocation6 + $0xec] sm:$0xf]
        %v460 = vld [vmem:[#allocation6 + $0xf0] sm:$0xf]
        %v461 = vld [vmem:[#allocation6 + $0xf4] sm:$0xf]
        %v462 = vld [vmem:[#allocation6 + $0xf8] sm:$0xf]
        %v463 = vld [vmem:[#allocation6 + $0xfc] sm:$0xf]
        %v464 = vld [vmem:[#allocation6 + $0x100] sm:$0xf]
        %v465 = vld [vmem:[#allocation6 + $0x104] sm:$0xf]
        %v466 = vld [vmem:[#allocation6 + $0x108] sm:$0xf]
        %v467 = vld [vmem:[#allocation6 + $0x10c] sm:$0xf]
        %v468 = vld [vmem:[#allocation6 + $0x110] sm:$0xf]
        %v469 = vld [vmem:[#allocation6 + $0x114] sm:$0xf]
        %v470 = vld [vmem:[#allocation6 + $0x118] sm:$0xf]
        %v471 = vld [vmem:[#allocation6 + $0x11c] sm:$0xf]
        %v472 = vld [vmem:[#allocation6 + $0x120] sm:$0xf]
        %v473 = vld [vmem:[#allocation6 + $0x124] sm:$0xf]
        %v474 = vld [vmem:[#allocation6 + $0x128] sm:$0xf]
        %v475 = vld [vmem:[#allocation6 + $0x12c] sm:$0xf]
        %v476 = vld [vmem:[#allocation6 + $0x130] sm:$0xf]
        %v477 = vld [vmem:[#allocation6 + $0x134] sm:$0xf]
        %v478 = vld [vmem:[#allocation6 + $0x138] sm:$0xf]
        %v479 = vld [vmem:[#allocation6 + $0x13c] sm:$0xf]
        %v480 = vld [vmem:[#allocation6 + $0x140] sm:$0xf]
        %v481 = vld [vmem:[#allocation6 + $0x144] sm:$0xf]
        %v482 = vld [vmem:[#allocation6 + $0x148] sm:$0xf]
        %v483 = vld [vmem:[#allocation6 + $0x14c] sm:$0xf]
        %v484 = vld [vmem:[#allocation6 + $0x150] sm:$0xf]
        %v485 = vld [vmem:[#allocation6 + $0x154] sm:$0xf]
        %v486 = vld [vmem:[#allocation6 + $0x158] sm:$0xf]
        %v487 = vld [vmem:[#allocation6 + $0x15c] sm:$0xf]
        %v488 = vld [vmem:[#allocation6 + $0x160] sm:$0xf]
        %v489 = vld [vmem:[#allocation6 + $0x164] sm:$0xf]
        %v490 = vld [vmem:[#allocation6 + $0x168] sm:$0xf]
        %v491 = vld [vmem:[#allocation6 + $0x16c] sm:$0xf]
        %v492 = vld [vmem:[#allocation6 + $0x170] sm:$0xf]
        %v493 = vld [vmem:[#allocation6 + $0x174] sm:$0xf]
        %v494 = vld [vmem:[#allocation6 + $0x178] sm:$0xf]
        %v495 = vld [vmem:[#allocation6 + $0x17c] sm:$0xf]
        %v496 = vld [vmem:[#allocation6 + $0x180] sm:$0xf]
        %v497 = vld [vmem:[#allocation6 + $0x184] sm:$0xf]
        %v498 = vld [vmem:[#allocation6 + $0x188] sm:$0xf]
        %v499 = vld [vmem:[#allocation6 + $0x18c] sm:$0xf]
        %v500 = vld [vmem:[#allocation6 + $0x190] sm:$0xf]
        %v501 = vld [vmem:[#allocation6 + $0x194] sm:$0xf]
        %v502 = vld [vmem:[#allocation6 + $0x198] sm:$0xf]
        %v503 = vld [vmem:[#allocation6 + $0x19c] sm:$0xf]
        %v504 = vld [vmem:[#allocation6 + $0x1a0] sm:$0xf]
        %v505 = vld [vmem:[#allocation6 + $0x1a4] sm:$0xf]
        %v506 = vld [vmem:[#allocation6 + $0x1a8] sm:$0xf]
        %v507 = vld [vmem:[#allocation6 + $0x1ac] sm:$0xf]
        %v508 = vld [vmem:[#allocation6 + $0x1b0] sm:$0xf]
        %v509 = vld [vmem:[#allocation6 + $0x1b4] sm:$0xf]
        %v510 = vld [vmem:[#allocation6 + $0x1b8] sm:$0xf]
        %v511 = vld [vmem:[#allocation6 + $0x1bc] sm:$0xf]
        %v512 = vld [vmem:[#allocation6 + $0x1c0] sm:$0xf]
        %v513 = vld [vmem:[#allocation6 + $0x1c4] sm:$0xf]
        %v514 = vld [vmem:[#allocation6 + $0x1c8] sm:$0xf]
        %v515 = vld [vmem:[#allocation6 + $0x1cc] sm:$0xf]
        %v516 = vld [vmem:[#allocation6 + $0x1d0] sm:$0xf]
        %v517 = vld [vmem:[#allocation6 + $0x1d4] sm:$0xf]
        %v518 = vld [vmem:[#allocation6 + $0x1d8] sm:$0xf]
        %v519 = vld [vmem:[#allocation6 + $0x1dc] sm:$0xf]
        %v520 = vld [vmem:[#allocation6 + $0x1e0] sm:$0xf]
        %v521 = vld [vmem:[#allocation6 + $0x1e4] sm:$0xf]
        %v522 = vld [vmem:[#allocation6 + $0x1e8] sm:$0xf]
        %v523 = vld [vmem:[#allocation6 + $0x1ec] sm:$0xf]
        %v524 = vld [vmem:[#allocation6 + $0x1f0] sm:$0xf]
        %v525 = vld [vmem:[#allocation6 + $0x1f4] sm:$0xf]
        %v526 = vld [vmem:[#allocation6 + $0x1f8] sm:$0xf]
        %v527 = vld [vmem:[#allocation6 + $0x1fc] sm:$0xf]
        %v528 = vld [vmem:[#allocation6 + $0x200] sm:$0xf]
        %v529 = vld [vmem:[#allocation6 + $0x204] sm:$0xf]
        %v530 = vld [vmem:[#allocation6 + $0x208] sm:$0xf]
        %v531 = vld [vmem:[#allocation6 + $0x20c] sm:$0xf]
        %v532 = vld [vmem:[#allocation6 + $0x210] sm:$0xf]
        %v533 = vld [vmem:[#allocation6 + $0x214] sm:$0xf]
        %v534 = vld [vmem:[#allocation6 + $0x218] sm:$0xf]
        %v535 = vld [vmem:[#allocation6 + $0x21c] sm:$0xf]
        %v536 = vld [vmem:[#allocation6 + $0x220] sm:$0xf]
        %v537 = vld [vmem:[#allocation6 + $0x224] sm:$0xf]
        %v538 = vld [vmem:[#allocation6 + $0x228] sm:$0xf]
        %v539 = vld [vmem:[#allocation6 + $0x22c] sm:$0xf]
        %v540 = vld [vmem:[#allocation6 + $0x230] sm:$0xf]
        %v541 = vld [vmem:[#allocation6 + $0x234] sm:$0xf]
        %v542 = vld [vmem:[#allocation6 + $0x238] sm:$0xf]
        %v543 = vld [vmem:[#allocation6 + $0x23c] sm:$0xf]
        %v688 = vunpack.c.l.b16 %v400
        %v689 = vunpack.c.l.b16 %v401
        %v690 = vunpack.c.l.b16 %v402
        %v691 = vunpack.c.l.b16 %v403
        %v692 = vunpack.c.l.b16 %v404
        %v693 = vunpack.c.l.b16 %v405
        %v694 = vunpack.c.l.b16 %v406
        %v695 = vunpack.c.l.b16 %v407
        %v696 = vunpack.c.l.b16 %v408
        %v697 = vunpack.c.l.b16 %v409
        %v698 = vunpack.c.l.b16 %v410
        %v699 = vunpack.c.l.b16 %v411
        %v700 = vunpack.c.l.b16 %v412
        %v701 = vunpack.c.l.b16 %v413
        %v702 = vunpack.c.l.b16 %v414
        %v703 = vunpack.c.l.b16 %v415
        %v704 = vunpack.c.l.b16 %v416
        %v705 = vunpack.c.l.b16 %v417
        %v706 = vunpack.c.l.b16 %v418
        %v707 = vunpack.c.l.b16 %v419
        %v708 = vunpack.c.l.b16 %v420
        %v709 = vunpack.c.l.b16 %v421
        %v710 = vunpack.c.l.b16 %v422
        %v711 = vunpack.c.l.b16 %v423
        %v712 = vunpack.c.l.b16 %v424
        %v713 = vunpack.c.l.b16 %v425
        %v714 = vunpack.c.l.b16 %v426
        %v715 = vunpack.c.l.b16 %v427
        %v716 = vunpack.c.l.b16 %v428
        %v717 = vunpack.c.l.b16 %v429
        %v718 = vunpack.c.l.b16 %v430
        %v719 = vunpack.c.l.b16 %v431
        %v720 = vunpack.c.l.b16 %v432
        %v721 = vunpack.c.l.b16 %v433
        %v722 = vunpack.c.l.b16 %v434
        %v723 = vunpack.c.l.b16 %v435
        %v724 = vunpack.c.l.b16 %v436
        %v725 = vunpack.c.l.b16 %v437
        %v726 = vunpack.c.l.b16 %v438
        %v727 = vunpack.c.l.b16 %v439
        %v728 = vunpack.c.l.b16 %v440
        %v729 = vunpack.c.l.b16 %v441
        %v730 = vunpack.c.l.b16 %v442
        %v731 = vunpack.c.l.b16 %v443
        %v732 = vunpack.c.l.b16 %v444
        %v733 = vunpack.c.l.b16 %v445
        %v734 = vunpack.c.l.b16 %v446
        %v735 = vunpack.c.l.b16 %v447
        %v736 = vunpack.c.l.b16 %v448
        %v737 = vunpack.c.l.b16 %v449
        %v738 = vunpack.c.l.b16 %v450
        %v739 = vunpack.c.l.b16 %v451
        %v740 = vunpack.c.l.b16 %v452
        %v741 = vunpack.c.l.b16 %v453
        %v742 = vunpack.c.l.b16 %v454
        %v743 = vunpack.c.l.b16 %v455
        %v744 = vunpack.c.l.b16 %v456
        %v745 = vunpack.c.l.b16 %v457
        %v746 = vunpack.c.l.b16 %v458
        %v747 = vunpack.c.l.b16 %v459
        %v748 = vunpack.c.l.b16 %v460
        %v749 = vunpack.c.l.b16 %v461
        %v750 = vunpack.c.l.b16 %v462
        %v751 = vunpack.c.l.b16 %v463
        %v752 = vunpack.c.l.b16 %v464
        %v753 = vunpack.c.l.b16 %v465
        %v754 = vunpack.c.l.b16 %v466
        %v755 = vunpack.c.l.b16 %v467
        %v756 = vunpack.c.l.b16 %v468
        %v757 = vunpack.c.l.b16 %v469
        %v758 = vunpack.c.l.b16 %v470
        %v759 = vunpack.c.l.b16 %v471
        %v760 = vunpack.c.l.b16 %v472
        %v761 = vunpack.c.l.b16 %v473
        %v762 = vunpack.c.l.b16 %v474
        %v763 = vunpack.c.l.b16 %v475
        %v764 = vunpack.c.l.b16 %v476
        %v765 = vunpack.c.l.b16 %v477
        %v766 = vunpack.c.l.b16 %v478
        %v767 = vunpack.c.l.b16 %v479
        %v768 = vunpack.c.l.b16 %v480
        %v769 = vunpack.c.l.b16 %v481
        %v770 = vunpack.c.l.b16 %v482
        %v771 = vunpack.c.l.b16 %v483
        %v772 = vunpack.c.l.b16 %v484
        %v773 = vunpack.c.l.b16 %v485
        %v774 = vunpack.c.l.b16 %v486
        %v775 = vunpack.c.l.b16 %v487
        %v776 = vunpack.c.l.b16 %v488
        %v777 = vunpack.c.l.b16 %v489
        %v778 = vunpack.c.l.b16 %v490
        %v779 = vunpack.c.l.b16 %v491
        %v780 = vunpack.c.l.b16 %v492
        %v781 = vunpack.c.l.b16 %v493
        %v782 = vunpack.c.l.b16 %v494
        %v783 = vunpack.c.l.b16 %v495
        %v784 = vunpack.c.l.b16 %v496
        %v785 = vunpack.c.l.b16 %v497
        %v786 = vunpack.c.l.b16 %v498
        %v787 = vunpack.c.l.b16 %v499
        %v788 = vunpack.c.l.b16 %v500
        %v789 = vunpack.c.l.b16 %v501
        %v790 = vunpack.c.l.b16 %v502
        %v791 = vunpack.c.l.b16 %v503
        %v792 = vunpack.c.l.b16 %v504
        %v793 = vunpack.c.l.b16 %v505
        %v794 = vunpack.c.l.b16 %v506
        %v795 = vunpack.c.l.b16 %v507
        %v796 = vunpack.c.l.b16 %v508
        %v797 = vunpack.c.l.b16 %v509
        %v798 = vunpack.c.l.b16 %v510
        %v799 = vunpack.c.l.b16 %v511
        %v800 = vunpack.c.l.b16 %v512
        %v801 = vunpack.c.l.b16 %v513
        %v802 = vunpack.c.l.b16 %v514
        %v803 = vunpack.c.l.b16 %v515
        %v804 = vunpack.c.l.b16 %v516
        %v805 = vunpack.c.l.b16 %v517
        %v806 = vunpack.c.l.b16 %v518
        %v807 = vunpack.c.l.b16 %v519
        %v808 = vunpack.c.l.b16 %v520
        %v809 = vunpack.c.l.b16 %v521
        %v810 = vunpack.c.l.b16 %v522
        %v811 = vunpack.c.l.b16 %v523
        %v812 = vunpack.c.l.b16 %v524
        %v813 = vunpack.c.l.b16 %v525
        %v814 = vunpack.c.l.b16 %v526
        %v815 = vunpack.c.l.b16 %v527
        %v816 = vunpack.c.l.b16 %v528
        %v817 = vunpack.c.l.b16 %v529
        %v818 = vunpack.c.l.b16 %v530
        %v819 = vunpack.c.l.b16 %v531
        %v820 = vunpack.c.l.b16 %v532
        %v821 = vunpack.c.l.b16 %v533
        %v822 = vunpack.c.l.b16 %v534
        %v823 = vunpack.c.l.b16 %v535
        %v824 = vunpack.c.l.b16 %v536
        %v825 = vunpack.c.l.b16 %v537
        %v826 = vunpack.c.l.b16 %v538
        %v827 = vunpack.c.l.b16 %v539
        %v828 = vunpack.c.l.b16 %v540
        %v829 = vunpack.c.l.b16 %v541
        %v830 = vunpack.c.l.b16 %v542
        %v831 = vunpack.c.l.b16 %v543
        %v832 = vpack.c.b16 %v689, %v688
        %v833 = vpack.c.b16 %v691, %v690
        %v834 = vpack.c.b16 %v693, %v692
        %v835 = vpack.c.b16 %v695, %v694
        %v836 = vpack.c.b16 %v697, %v696
        %v837 = vpack.c.b16 %v699, %v698
        %v838 = vpack.c.b16 %v701, %v700
        %v839 = vpack.c.b16 %v703, %v702
        %v840 = vpack.c.b16 %v705, %v704
        %v841 = vpack.c.b16 %v707, %v706
        %v842 = vpack.c.b16 %v709, %v708
        %v843 = vpack.c.b16 %v711, %v710
        %v844 = vpack.c.b16 %v713, %v712
        %v845 = vpack.c.b16 %v715, %v714
        %v846 = vpack.c.b16 %v717, %v716
        %v847 = vpack.c.b16 %v719, %v718
        %v848 = vpack.c.b16 %v721, %v720
        %v849 = vpack.c.b16 %v723, %v722
        %v850 = vpack.c.b16 %v725, %v724
        %v851 = vpack.c.b16 %v727, %v726
        %v852 = vpack.c.b16 %v729, %v728
        %v853 = vpack.c.b16 %v731, %v730
        %v854 = vpack.c.b16 %v733, %v732
        %v855 = vpack.c.b16 %v735, %v734
        %v856 = vpack.c.b16 %v737, %v736
        %v857 = vpack.c.b16 %v739, %v738
        %v858 = vpack.c.b16 %v741, %v740
        %v859 = vpack.c.b16 %v743, %v742
        %v860 = vpack.c.b16 %v745, %v744
        %v861 = vpack.c.b16 %v747, %v746
        %v862 = vpack.c.b16 %v749, %v748
        %v863 = vpack.c.b16 %v751, %v750
        %v864 = vpack.c.b16 %v753, %v752
        %v865 = vpack.c.b16 %v755, %v754
        %v866 = vpack.c.b16 %v757, %v756
        %v867 = vpack.c.b16 %v759, %v758
        %v868 = vpack.c.b16 %v761, %v760
        %v869 = vpack.c.b16 %v763, %v762
        %v870 = vpack.c.b16 %v765, %v764
        %v871 = vpack.c.b16 %v767, %v766
        %v872 = vpack.c.b16 %v769, %v768
        %v873 = vpack.c.b16 %v771, %v770
        %v874 = vpack.c.b16 %v773, %v772
        %v875 = vpack.c.b16 %v775, %v774
        %v876 = vpack.c.b16 %v777, %v776
        %v877 = vpack.c.b16 %v779, %v778
        %v878 = vpack.c.b16 %v781, %v780
        %v879 = vpack.c.b16 %v783, %v782
        %v880 = vpack.c.b16 %v785, %v784
        %v881 = vpack.c.b16 %v787, %v786
        %v882 = vpack.c.b16 %v789, %v788
        %v883 = vpack.c.b16 %v791, %v790
        %v884 = vpack.c.b16 %v793, %v792
        %v885 = vpack.c.b16 %v795, %v794
        %v886 = vpack.c.b16 %v797, %v796
        %v887 = vpack.c.b16 %v799, %v798
        %v888 = vpack.c.b16 %v801, %v800
        %v889 = vpack.c.b16 %v803, %v802
        %v890 = vpack.c.b16 %v805, %v804
        %v891 = vpack.c.b16 %v807, %v806
        %v892 = vpack.c.b16 %v809, %v808
        %v893 = vpack.c.b16 %v811, %v810
        %v894 = vpack.c.b16 %v813, %v812
        %v895 = vpack.c.b16 %v815, %v814
        %v896 = vpack.c.b16 %v817, %v816
        %v897 = vpack.c.b16 %v819, %v818
        %v898 = vpack.c.b16 %v821, %v820
        %v899 = vpack.c.b16 %v823, %v822
        %v900 = vpack.c.b16 %v825, %v824
        %v901 = vpack.c.b16 %v827, %v826
        %v902 = vpack.c.b16 %v829, %v828
        %v903 = vpack.c.b16 %v831, %v830
        %976 = vmatprep.subr.bf16.mxu0 0
        %977 = vmatpush1.bf16.msra.mxu0 %v839
        %978 = vmatprep.subr.bf16.mxu0 0
        %979 = vmatpush1.bf16.msra.mxu0 %v838
        %980 = vmatprep.subr.bf16.mxu0 0
        %981 = vmatpush1.bf16.msra.mxu0 %v837
        %982 = vmatprep.subr.bf16.mxu0 0
        %983 = vmatpush1.bf16.msra.mxu0 %v836
        %984 = vmatprep.subr.bf16.mxu0 0
        %985 = vmatpush1.bf16.msra.mxu0 %v835
        %986 = vmatprep.subr.bf16.mxu0 0
        %987 = vmatpush1.bf16.msra.mxu0 %v834
        %988 = vmatprep.subr.bf16.mxu0 0
        %989 = vmatpush1.bf16.msra.mxu0 %v833
        %990 = vmatprep.subr.bf16.mxu0 0
        %991 = vmatpush1.bf16.msra.mxu0 %v832
        %992 = vmatprep.subr.bf16.mxu0 0
        %993 = vmatpush2.bf16.msra.mxu0 %v847
        %994 = vmatprep.subr.bf16.mxu0 0
        %995 = vmatpush2.bf16.msra.mxu0 %v846
        %996 = vmatprep.subr.bf16.mxu0 0
        %997 = vmatpush2.bf16.msra.mxu0 %v845
        %998 = vmatprep.subr.bf16.mxu0 0
        %999 = vmatpush2.bf16.msra.mxu0 %v844
        %1000 = vmatprep.subr.bf16.mxu0 0
        %1001 = vmatpush2.bf16.msra.mxu0 %v843
        %1002 = vmatprep.subr.bf16.mxu0 0
        %1003 = vmatpush2.bf16.msra.mxu0 %v842
        %1004 = vmatprep.subr.bf16.mxu0 0
        %1005 = vmatpush2.bf16.msra.mxu0 %v841
        %1006 = vmatprep.subr.bf16.mxu0 0
        %1007 = vmatpush2.bf16.msra.mxu0 %v840
        %1008 = vmatprep.mubr.bf16.mxu0 %v392
        %1009 = vmatmul.mubr.bf16.gmra.mxu0 %v391
        %v1010 = vpop.f32.mrf.mxu0
        %v1011 = vadd.f32 0.0, %v1010
        %v1012 = vpop.f32.mrf.mxu0
        %v1013 = vpop.f32.mrf.mxu0
        %v1014 = vadd.f32 0.0, %v1013
        %v1015 = vpop.f32.mrf.mxu0
        %1016 = vdwg.mxu0
        %1017 = vmatprep.subr.bf16.mxu0 0
        %1018 = vmatpush1.bf16.msra.mxu0 %v855
        %1019 = vmatprep.subr.bf16.mxu0 0
        %1020 = vmatpush1.bf16.msra.mxu0 %v854
        %1021 = vmatprep.subr.bf16.mxu0 0
        %1022 = vmatpush1.bf16.msra.mxu0 %v853
        %1023 = vmatprep.subr.bf16.mxu0 0
        %1024 = vmatpush1.bf16.msra.mxu0 %v852
        %1025 = vmatprep.subr.bf16.mxu0 0
        %1026 = vmatpush1.bf16.msra.mxu0 %v851
        %1027 = vmatprep.subr.bf16.mxu0 0
        %1028 = vmatpush1.bf16.msra.mxu0 %v850
        %1029 = vmatprep.subr.bf16.mxu0 0
        %1030 = vmatpush1.bf16.msra.mxu0 %v849
        %1031 = vmatprep.subr.bf16.mxu0 0
        %1032 = vmatpush1.bf16.msra.mxu0 %v848
        %1033 = vmatprep.subr.bf16.mxu0 0
        %1034 = vmatpush2.bf16.msra.mxu0 %v863
        %1035 = vmatprep.subr.bf16.mxu0 0
        %1036 = vmatpush2.bf16.msra.mxu0 %v862
        %1037 = vmatprep.subr.bf16.mxu0 0
        %1038 = vmatpush2.bf16.msra.mxu0 %v861
        %1039 = vmatprep.subr.bf16.mxu0 0
        %1040 = vmatpush2.bf16.msra.mxu0 %v860
        %1041 = vmatprep.subr.bf16.mxu0 0
        %1042 = vmatpush2.bf16.msra.mxu0 %v859
        %1043 = vmatprep.subr.bf16.mxu0 0
        %1044 = vmatpush2.bf16.msra.mxu0 %v858
        %1045 = vmatprep.subr.bf16.mxu0 0
        %1046 = vmatpush2.bf16.msra.mxu0 %v857
        %1047 = vmatprep.subr.bf16.mxu0 0
        %1048 = vmatpush2.bf16.msra.mxu0 %v856
        %1049 = vmatprep.mubr.bf16.mxu0 %v394
        %1050 = vmatmul.mubr.bf16.gmra.mxu0 %v393
        %v1051 = vpop.f32.mrf.mxu0
        %v1052 = vadd.f32 %v1011, %v1051
        %v1053 = vpop.f32.mrf.mxu0
        %v1054 = vpop.f32.mrf.mxu0
        %v1055 = vadd.f32 %v1014, %v1054
        %v1056 = vpop.f32.mrf.mxu0
        %1057 = vdwg.mxu0
        %1058 = vmatprep.subr.bf16.mxu0 0
        %1059 = vmatpush1.bf16.msra.mxu0 %v871
        %1060 = vmatprep.subr.bf16.mxu0 0
        %1061 = vmatpush1.bf16.msra.mxu0 %v870
        %1062 = vmatprep.subr.bf16.mxu0 0
        %1063 = vmatpush1.bf16.msra.mxu0 %v869
        %1064 = vmatprep.subr.bf16.mxu0 0
        %1065 = vmatpush1.bf16.msra.mxu0 %v868
        %1066 = vmatprep.subr.bf16.mxu0 0
        %1067 = vmatpush1.bf16.msra.mxu0 %v867
        %1068 = vmatprep.subr.bf16.mxu0 0
        %1069 = vmatpush1.bf16.msra.mxu0 %v866
        %1070 = vmatprep.subr.bf16.mxu0 0
        %1071 = vmatpush1.bf16.msra.mxu0 %v865
        %1072 = vmatprep.subr.bf16.mxu0 0
        %1073 = vmatpush1.bf16.msra.mxu0 %v864
        %1074 = vmatprep.subr.bf16.mxu0 0
        %1075 = vmatpush2.bf16.msra.mxu0 %v879
        %1076 = vmatprep.subr.bf16.mxu0 0
        %1077 = vmatpush2.bf16.msra.mxu0 %v878
        %1078 = vmatprep.subr.bf16.mxu0 0
        %1079 = vmatpush2.bf16.msra.mxu0 %v877
        %1080 = vmatprep.subr.bf16.mxu0 0
        %1081 = vmatpush2.bf16.msra.mxu0 %v876
        %1082 = vmatprep.subr.bf16.mxu0 0
        %1083 = vmatpush2.bf16.msra.mxu0 %v875
        %1084 = vmatprep.subr.bf16.mxu0 0
        %1085 = vmatpush2.bf16.msra.mxu0 %v874
        %1086 = vmatprep.subr.bf16.mxu0 0
        %1087 = vmatpush2.bf16.msra.mxu0 %v873
        %1088 = vmatprep.subr.bf16.mxu0 0
        %1089 = vmatpush2.bf16.msra.mxu0 %v872
        %1090 = vmatprep.mubr.bf16.mxu0 %v396
        %1091 = vmatmul.mubr.bf16.gmra.mxu0 %v395
        %v1092 = vpop.f32.mrf.mxu0
        %v1093 = vadd.f32 %v1052, %v1092
        %v1094 = vpop.f32.mrf.mxu0
        %v1095 = vpop.f32.mrf.mxu0
        %v1096 = vadd.f32 %v1055, %v1095
        %v1097 = vpop.f32.mrf.mxu0
        %1098 = vdwg.mxu0
        %1099 = vmatprep.subr.bf16.mxu0 0
        %1100 = vmatpush1.bf16.msra.mxu0 %v887
        %1101 = vmatprep.subr.bf16.mxu0 0
        %1102 = vmatpush1.bf16.msra.mxu0 %v886
        %1103 = vmatprep.subr.bf16.mxu0 0
        %1104 = vmatpush1.bf16.msra.mxu0 %v885
        %1105 = vmatprep.subr.bf16.mxu0 0
        %1106 = vmatpush1.bf16.msra.mxu0 %v884
        %1107 = vmatprep.subr.bf16.mxu0 0
        %1108 = vmatpush1.bf16.msra.mxu0 %v883
        %1109 = vmatprep.subr.bf16.mxu0 0
        %1110 = vmatpush1.bf16.msra.mxu0 %v882
        %1111 = vmatprep.subr.bf16.mxu0 0
        %1112 = vmatpush1.bf16.msra.mxu0 %v881
        %1113 = vmatprep.subr.bf16.mxu0 0
        %1114 = vmatpush1.bf16.msra.mxu0 %v880
        %1115 = vmatprep.subr.bf16.mxu0 0
        %1116 = vmatpush2.bf16.msra.mxu0 %v895
        %1117 = vmatprep.subr.bf16.mxu0 0
        %1118 = vmatpush2.bf16.msra.mxu0 %v894
        %1119 = vmatprep.subr.bf16.mxu0 0
        %1120 = vmatpush2.bf16.msra.mxu0 %v893
        %1121 = vmatprep.subr.bf16.mxu0 0
        %1122 = vmatpush2.bf16.msra.mxu0 %v892
        %1123 = vmatprep.subr.bf16.mxu0 0
        %1124 = vmatpush2.bf16.msra.mxu0 %v891
        %1125 = vmatprep.subr.bf16.mxu0 0
        %1126 = vmatpush2.bf16.msra.mxu0 %v890
        %1127 = vmatprep.subr.bf16.mxu0 0
        %1128 = vmatpush2.bf16.msra.mxu0 %v889
        %1129 = vmatprep.subr.bf16.mxu0 0
        %1130 = vmatpush2.bf16.msra.mxu0 %v888
        %1131 = vmatprep.mubr.bf16.mxu0 %v398
        %1132 = vmatmul.mubr.bf16.gmra.mxu0 %v397
        %v1133 = vpop.f32.mrf.mxu0
        %v1134 = vadd.f32 %v1093, %v1133
        %v1135 = vpop.f32.mrf.mxu0
        %v1136 = vpop.f32.mrf.mxu0
        %v1137 = vadd.f32 %v1096, %v1136
        %v1138 = vpop.f32.mrf.mxu0
        %1139 = vdwg.mxu0
        %1140 = vmatprep.subr.bf16.mxu0 0
        %1141 = vmatpush1.bf16.msra.mxu0 %v903
        %1142 = vmatprep.subr.bf16.mxu0 0
        %1143 = vmatpush1.bf16.msra.mxu0 %v902
        %1144 = vmatprep.subr.bf16.mxu0 0
        %1145 = vmatpush1.bf16.msra.mxu0 %v901
        %1146 = vmatprep.subr.bf16.mxu0 0
        %1147 = vmatpush1.bf16.msra.mxu0 %v900
        %1148 = vmatprep.subr.bf16.mxu0 0
        %1149 = vmatpush1.bf16.msra.mxu0 %v899
        %1150 = vmatprep.subr.bf16.mxu0 0
        %1151 = vmatpush1.bf16.msra.mxu0 %v898
        %1152 = vmatprep.subr.bf16.mxu0 0
        %1153 = vmatpush1.bf16.msra.mxu0 %v897
        %1154 = vmatprep.subr.bf16.mxu0 0
        %1155 = vmatpush1.bf16.msra.mxu0 %v896
        %1156 = vmatprep.subr.bf16.mxu0 0
        %1157 = vmatpush2.bf16.msra.mxu0 0
        %1158 = vmatprep.subr.bf16.mxu0 0
        %1159 = vmatpush2.bf16.msra.mxu0 0
        %1160 = vmatprep.subr.bf16.mxu0 0
        %1161 = vmatpush2.bf16.msra.mxu0 0
        %1162 = vmatprep.subr.bf16.mxu0 0
        %1163 = vmatpush2.bf16.msra.mxu0 0
        %1164 = vmatprep.subr.bf16.mxu0 0
        %1165 = vmatpush2.bf16.msra.mxu0 0
        %1166 = vmatprep.subr.bf16.mxu0 0
        %1167 = vmatpush2.bf16.msra.mxu0 0
        %1168 = vmatprep.subr.bf16.mxu0 0
        %1169 = vmatpush2.bf16.msra.mxu0 0
        %1170 = vmatprep.subr.bf16.mxu0 0
        %1171 = vmatpush2.bf16.msra.mxu0 0
        %1172 = vmatprep.mubr.bf16.mxu0 0
        %1173 = vmatmul.mubr.bf16.gmra.mxu0 %v399
        %v1174 = vpop.f32.mrf.mxu0
        %v1175 = vadd.f32 %v1134, %v1174
        %v1176 = vpop.f32.mrf.mxu0
        %v1177 = vpop.f32.mrf.mxu0
        %v1178 = vadd.f32 %v1137, %v1177
        %v1179 = vpop.f32.mrf.mxu0
        %1180 = vdwg.mxu0
        %v1183 = vcombine.high %v1175, %v1175
        %v1184 = vcombine.high %v1178, %v1178
        %1187 = vst [vmem:[%s230] sm:$0xf] %v1175
        %1188 = vst [vmem:[%s230 + $0x4] sm:$0xf] %v1183
        %1189 = vst [vmem:[%s230 + $0x8] sm:$0xf] %v1178
        %1190 = vst [vmem:[%s230 + $0xc] sm:$0xf] %v1184
        %s1191 = sand.u32 %s119, 1
        %s1192 = scalar_lea.sflag [#allocation5], %s1191
        %s1193 = sand.u32 %s119, 1
        %s1194 = smul.addr %s1193, 16
        %s1195 = scalar_lea.vmem [#allocation8], %s1194
        // Predicated region
        $region45: #{tpu_custom_call.1} parent=35 // pred_check
          %p1196 = pneg %p129
        $region46: #{tpu_custom_call.1} parent=35 // pred_check_branch
          %1198 = sbr.rel (%p1196) target = $region48
        $region47: #{tpu_custom_call.1} parent=35 // pred_region
          %s1200 = ssub.s32 256, 256
          %1201 = vsyncadd %s1192, %s1200
          %s1202 = smul.addr %s22, 4
          %s1203 = smul.addr %s1202, 64
          %s1204 = scalar_lea.hbm %s4, %s1203
          %s1205 = sshll.u32 %s1195, 4
          %s1206 = int_to_ptr.vmem [resolvable:$true] %s1205
          %1211 = dma.vmem_to_hbm [thread:$0]  %s1206, 256, %s1204, %s1192, 64, 64, 4
        $region48: #{tpu_custom_call.1} parent=35 // pred_fallthru
          _
      $region36: #{tpu_custom_call.1} parent=5 // pred_fallthru
        _
      %p1212 = scmp.le.s32.totalorder 2, %s17
      // Predicated region
      $region49: #{tpu_custom_call.1} parent=5 // pred_check
        %p1213 = pneg %p1212
      $region50: #{tpu_custom_call.1} parent=5 // pred_check_branch
        %1215 = sbr.rel (%p1213) target = $region52
      $region51: #{tpu_custom_call.1} parent=5 // pred_region
        %s1216 = ssub.s32 %s17, 2
        // Predicated region
        $region53: #{tpu_custom_call.1} parent=51 // pred_check
          %p1217 = pneg %p135
        $region54: #{tpu_custom_call.1} parent=51 // pred_check_branch
          %1219 = sbr.rel (%p1217) target = $region56
        $region55: #{tpu_custom_call.1} parent=51 // pred_region
          %s1220 = sand.u32 %s120, 1
          %s1221 = scalar_lea.sflag [#allocation5], %s1220
          %s1222 = sand.u32 %s120, 1
          %s1223 = smul.addr %s1222, 16
          %s1224 = scalar_lea.vmem [#allocation8], %s1223
          %1225 = dma.done %s1221, 256
        $region56: #{tpu_custom_call.1} parent=51 // pred_fallthru
          _
      $region52: #{tpu_custom_call.1} parent=5 // pred_fallthru
        _
    $region6: #{tpu_custom_call.1} parent=1 // loop_footer
      %s21 = sadd.s32 1, %s17
    $region7: #{tpu_custom_call.1} parent=1 // loop_footer_branch
      %16 = sbr.rel target = $region3
    $region8: #{tpu_custom_call.1} parent=1 // loop_exit
      _
    %1226 = vsyncpa [#allocation4], 1
    %s1227 = scalar_lea.sflag [#allocation4], 1
    %1228 = vsyncpa %s1227, 1
    %1229 = vsyncpa [#allocation7], 1
    %1230 = vsyncpa [#allocation5], 1
    %s1231 = scalar_lea.sflag [#allocation5], 1
    %1232 = vsyncpa %s1231, 1

</llo_original>
